<compile_context>
chip_gen: v7x
topology: tpu7x:2x2x1
jax: 0.10.0
libtpu: 0.0.40
codegen_flags: <defaults>
</compile_context>

<pallas_src>
import functools

import numpy as np
import jax
import jax.numpy as jnp
from jax.experimental import pallas as pl
from jax.experimental.pallas import tpu as pltpu


# ---------------------------------------------------------------------------
# Kernel
# ---------------------------------------------------------------------------
def _basic_block_kernel(x_ref, m_ref, w1_ref, w2_ref, w3_ref,
                        b1_ref, b2_ref, b3_ref, o_ref, *,
                        shifts, fuse_k, matmul_dtype):
    x = x_ref[0]                       # (Cp, L) f32 slab, zeros at halo/tail positions
    L = x.shape[-1]
    # Hoist the (1, L) -> (Cp, L) mask broadcast once (JAX does not CSE broadcasts).
    mask = jnp.broadcast_to(m_ref[...], x.shape)

    # bf16 operands -> single MXU pass (DEFAULT); f32 operands -> exact (HIGHEST).
    prec = jax.lax.Precision.HIGHEST if matmul_dtype == jnp.float32 else None

    def lrelu(v):
        return jnp.where(v > 0, v, 0.1 * v)

    def conv_bn(cur, w_ref, b_ref):
        # 9 shifted taps via static lane rotations (XLU).  Roll wrap-around only ever
        # lands on halo/tail positions (per-sample tail >= Wp+1), which are masked
        # before the next conv or dropped by the wrapper.
        def tap(d):
            return cur if d == 0 else pltpu.roll(cur, shift=(-d) % L, axis=1)

        if fuse_k:
            # One fused matmul, K = 9*Cp; taps concatenated in f32 (sublane-aligned
            # copies with Cp a multiple of 8), cast to bf16 right before the dot.
            t = jnp.concatenate([tap(d) for d in shifts], axis=0)       # (9*Cp, L)
            out = jnp.dot(w_ref[...], t.astype(matmul_dtype),
                          preferred_element_type=jnp.float32, precision=prec)
        else:
            # VMEM-lean variant: never materializes the (9*Cp, L) taps tensor.
            w = w_ref[...]
            cp = w.shape[0]
            out = None
            for idx, d in enumerate(shifts):
                part = jnp.dot(w[:, idx * cp:(idx + 1) * cp],
                               tap(d).astype(matmul_dtype),
                               preferred_element_type=jnp.float32, precision=prec)
                out = part if out is None else out + part
        return out + b_ref[...]                                          # BN shift

    out = lrelu(conv_bn(x, w1_ref, b1_ref)) * mask
    out = lrelu(conv_bn(out, w2_ref, b2_ref)) * mask
    out = conv_bn(out, w3_ref, b3_ref)
    out = lrelu(out + x)            # residual (downsample=None, inplanes == planes)
    # nn.MaxPool2d(1) is identity; eval-mode drop_rate==0 path is a no-op.
    # TODO(synk): stride>1 max-pool, downsample branch, SE layer, pre_active ordering and
    # training-mode DropBlock/dropout are not implemented (module defaults are off).
    o_ref[0] = out


# ---------------------------------------------------------------------------
# Host-side layout helpers (NCHW <-> lane-dense slabs).
# TODO(synk): when chaining several BasicBlocks, keep activations in the slab layout
# between blocks - each of these conversions is a few extra HBM passes on a
# memory-bound kernel.
# ---------------------------------------------------------------------------
def _nchw_to_slabs(x_nchw, Cp, Npad, NB, LP):
    N, C, H, W = x_nchw.shape
    Hp, Wp = H + 2, W + 2
    lp = Hp * Wp
    G = Npad // NB
    xp = jnp.pad(x_nchw.astype(jnp.float32),
                 ((0, Npad - N), (0, Cp - C), (1, 1), (1, 1)))   # zero halo + padding
    xp = jnp.transpose(xp, (1, 0, 2, 3)).reshape(Cp, Npad, lp)
    xp = jnp.pad(xp, ((0, 0), (0, 0), (0, LP - lp)))
    return xp.reshape(Cp, G, NB * LP).transpose(1, 0, 2)          # (G, Cp, NB*LP)


def _slabs_to_nchw(slabs, N, C, H, W, NB, LP):
    Hp, Wp = H + 2, W + 2
    lp = Hp * Wp
    G, Cp, _ = slabs.shape
    out = slabs.transpose(1, 0, 2).reshape(Cp, G * NB, LP)[:C, :N, :lp]
    out = out.reshape(C, N, Hp, Wp)[:, :, 1:H + 1, 1:W + 1]
    return jnp.transpose(out, (1, 0, 2, 3))


def _vmem_budget_and_limit():
    """(per-step working-set budget, scoped-VMEM limit) in bytes, per chip generation."""
    try:
        kind = jax.devices()[0].device_kind.lower()
    except Exception:
        kind = ""
    if ("v5" in kind) or ("v6" in kind):       # 128 MiB physical VMEM: raise 32 MiB default
        return 72 * 2**20, 96 * 2**20
    # v7x (64 MiB per TensorCore) or unknown: stay conservative.
    return 40 * 2**20, 60 * 2**20


def _est_vmem_bytes(Cp, LB, fuse_k):
    """Rough per-grid-step VMEM working set (bytes)."""
    f32, bf16 = 4, 2
    io = 2 * (2 * Cp * LB * f32)                               # double-buffered in + out
    consts = 3 * Cp * 9 * Cp * bf16 + 3 * Cp * f32 + LB * f32  # single-buffered constants
    taps = 9 * Cp * LB * (f32 + bf16) if fuse_k else 2 * Cp * LB * (f32 + bf16)
    live = 3 * Cp * LB * f32                                   # f32 accumulator / temps
    return io + consts + taps + live


def _const_spec(shape):
    """Grid-invariant operand: constant index_map, single-buffered (halves its VMEM)."""
    n = len(shape)

    def index_map(g):
        return (0,) * n

    buffered = getattr(pl, "Buffered", None)
    if buffered is not None:
        try:
            return pl.BlockSpec(shape, index_map, pipeline_mode=buffered(1))
        except TypeError:        # older jax without pipeline_mode: fall back gracefully
            pass
    return pl.BlockSpec(shape, index_map)


# ---------------------------------------------------------------------------
# Wrapper
# ---------------------------------------------------------------------------
def basic_block_variant(x_nchw, params, *, samples_per_step=None, fuse_k=None,
                        matmul_dtype=jnp.bfloat16):
    """BasicBlockVariant forward (eval mode, default ctor args).

    x_nchw: (N, C, H, W) float32 -> (N, C, H, W) float32.
    matmul_dtype: jnp.bfloat16 (default, single MXU pass, ~1e-3 error) or jnp.float32
      (exact, Precision.HIGHEST matmuls) for callers that need f32-exact results.
    """
    N, C, H, W = x_nchw.shape
    Cp = ((C + 7) // 8) * 8                    # channels padded to the f32 sublane count
    Hp, Wp = H + 2, W + 2
    lp = Hp * Wp                               # per-sample zero-padded pixel count
    # Per-sample slab length: lane-aligned AND with a zero tail >= Wp+1 (largest tap
    # shift) so rolled taps never wrap across sample boundaries / the slab end.
    LP = ((lp + Wp + 1 + 127) // 128) * 128

    budget, vmem_limit = _vmem_budget_and_limit()

    # Samples per grid step: big slabs (>= ~2048 lanes) amortize the ~0.35us/step
    # overhead; keep G >= 2 so both v7x TensorCores get work; stay inside the budget.
    if samples_per_step is None:
        nb = max(1, (2048 + LP - 1) // LP)
        if N >= 2:
            nb = min(nb, N // 2)               # keep at least 2 grid steps (megacore)
        nb = max(1, min(nb, N))
        while nb > 1 and _est_vmem_bytes(Cp, nb * LP, False) > budget:
            nb -= 1
        NB = nb
    else:
        NB = max(1, min(int(samples_per_step), N))
    G = -(-N // NB)                            # grid steps
    Npad = G * NB
    LB = NB * LP                               # lanes per grid step (multiple of 128)
    # Fused (Cp,9Cp)@(9Cp,LB) matmul unless its taps temporary would blow the budget;
    # then fall back to 9 accumulated dots that never materialize it (v7x / large C).
    if fuse_k is None:
        fuse_k = _est_vmem_bytes(Cp, LB, True) <= budget

    # TODO(synk): if N is too small to reach G >= 2 with a useful NB, split the lane
    # axis into a second "parallel" grid dim instead (keeps both v7x cores busy).

    # --- activations: NCHW -> zero-halo, channel-padded lane slabs (G, Cp, LB) ---
    xp = _nchw_to_slabs(x_nchw, Cp, Npad, NB, LP)

    # --- real-pixel mask (identical layout for every sample) ---
    m = jnp.zeros((Hp, Wp), jnp.float32).at[1:H + 1, 1:W + 1].set(1.0).reshape(lp)
    m = jnp.pad(m, (0, LP - lp))
    mask = jnp.tile(m, NB).reshape(1, LB)

    # --- weights: (C, C, 3, 3) -> (Cp, 9*Cp) matmul_dtype, BN scale folded in;
    #     BN shift -> (Cp, 1) f32 ---
    def fold(w_oihw, bn_stats, eps=1e-5):
        gamma, beta, mean, var = bn_stats
        scale = gamma / jnp.sqrt(var + eps)
        shift = beta - mean * scale
        w = jnp.pad(w_oihw * scale[:, None, None, None],
                    ((0, Cp - C), (0, Cp - C), (0, 0), (0, 0)))        # (Cp, Cp, 3, 3)
        wmat = jnp.transpose(w, (0, 2, 3, 1)).reshape(Cp, 9 * Cp)      # (Cout, kh, kw, Cin)
        b = jnp.pad(shift, (0, Cp - C)).reshape(Cp, 1)
        return wmat.astype(matmul_dtype), b.astype(jnp.float32)

    w1, b1 = fold(params['conv1'], params['bn1'])
    w2, b2 = fold(params['conv2'], params['bn2'])
    w3, b3 = fold(params['conv3'], params['bn3'])

    # Tap lane offsets, (kh, kw) row-major to match the weight reshape above.
    shifts = tuple(kh * Wp + kw for kh in (-1, 0, 1) for kw in (-1, 0, 1))

    kernel = functools.partial(_basic_block_kernel, shifts=shifts, fuse_k=fuse_k,
                               matmul_dtype=matmul_dtype)

    out = pl.pallas_call(
        kernel,
        out_shape=jax.ShapeDtypeStruct((G, Cp, LB), jnp.float32),
        grid_spec=pltpu.PrefetchScalarGridSpec(
            num_scalar_prefetch=0,
            grid=(G,),
            in_specs=[
                pl.BlockSpec((1, Cp, LB), lambda g: (g, 0, 0)),
                _const_spec((1, LB)),
                _const_spec((Cp, 9 * Cp)), _const_spec((Cp, 9 * Cp)), _const_spec((Cp, 9 * Cp)),
                _const_spec((Cp, 1)), _const_spec((Cp, 1)), _const_spec((Cp, 1)),
            ],
            out_specs=pl.BlockSpec((1, Cp, LB), lambda g: (g, 0, 0)),
        ),
        compiler_params=pltpu.CompilerParams(
            dimension_semantics=("parallel",),
            vmem_limit_bytes=vmem_limit),
    )(xp, mask, w1, w2, w3, b1, b2, b3)

    return _slabs_to_nchw(out, N, C, H, W, NB, LP)


# ---------------------------------------------------------------------------
# Pure-JAX (XLA) reference of the same eval-mode forward pass, NCHW, f32-exact.
# ---------------------------------------------------------------------------
def reference_basic_block(x, params):
    def conv(v, w):
        return jax.lax.conv_general_dilated(
            v, w, window_strides=(1, 1), padding=((1, 1), (1, 1)),
            dimension_numbers=('NCHW', 'OIHW', 'NCHW'),
            precision=jax.lax.Precision.HIGHEST)

    def bn(v, gamma, beta, mean, var, eps=1e-5):
        scale = gamma / jnp.sqrt(var + eps)
        shift = beta - mean * scale
        return v * scale[None, :, None, None] + shift[None, :, None, None]

    def lrelu(v):
        return jnp.where(v > 0, v, 0.1 * v)

    out = lrelu(bn(conv(x, params['conv1']), *params['bn1']))
    out = lrelu(bn(conv(out, params['conv2']), *params['bn2']))
    out = bn(conv(out, params['conv3']), *params['bn3'])
    out = out + x
    out = lrelu(out)
    return out  # MaxPool2d(1) is identity


if __name__ == "__main__":
    N, C, H, W = 2, 4, 16, 16   # inplanes = planes = 4

    key = jax.random.PRNGKey(0)
    keys = jax.random.split(key, 8)

    def conv_w(k):
        return 0.1 * jax.random.normal(k, (C, C, 3, 3), jnp.float32)

    def bn_params(k):
        kg, kb, km, kv = jax.random.split(k, 4)
        gamma = 1.0 + 0.1 * jax.random.normal(kg, (C,), jnp.float32)
        beta = 0.1 * jax.random.normal(kb, (C,), jnp.float32)
        mean = 0.1 * jax.random.normal(km, (C,), jnp.float32)
        var = 0.5 + 0.5 * jnp.abs(jax.random.normal(kv, (C,), jnp.float32))
        return (gamma, beta, mean, var)

    params = {
        'conv1': conv_w(keys[0]),
        'conv2': conv_w(keys[1]),
        'conv3': conv_w(keys[2]),
        'bn1': bn_params(keys[3]),
        'bn2': bn_params(keys[4]),
        'bn3': bn_params(keys[5]),
    }

    x = jax.random.normal(keys[6], (N, C, H, W), jnp.float32)

    ref = jax.block_until_ready(reference_basic_block(x, params))

    # Auto-tuned path (fused-K conv matmuls at this size).
    out = jax.block_until_ready(basic_block_variant(x, params))
    assert out.shape == (N, C, H, W), out.shape
    # Kernel matmuls use bf16 MXU operands (f32 accumulation) per the perf review; the
    # reference is f32-HIGHEST, so allow bf16-level rounding differences (>4x margin).
    np.testing.assert_allclose(np.asarray(out), np.asarray(ref), atol=2e-2, rtol=2e-2)

    # VMEM-lean path (9 accumulated dots; never materializes the (9*Cp, L) taps tensor).
    out_lean = jax.block_until_ready(basic_block_variant(x, params, fuse_k=False))
    np.testing.assert_allclose(np.asarray(out_lean), np.asarray(ref), atol=2e-2, rtol=2e-2)

    print("KERNEL_OK")
</pallas_src>

<mosaic_0001>
module attributes {stable_mosaic.version = 11 : i64} {
  func.func @_basic_block_kernel(%arg0: i32, %arg1: memref<1x8x384xf32, #tpu.memory_space<vmem>>, %arg2: memref<1x384xf32, #tpu.memory_space<vmem>>, %arg3: memref<8x72xbf16, #tpu.memory_space<vmem>>, %arg4: memref<8x72xbf16, #tpu.memory_space<vmem>>, %arg5: memref<8x72xbf16, #tpu.memory_space<vmem>>, %arg6: memref<8x1xf32, #tpu.memory_space<vmem>>, %arg7: memref<8x1xf32, #tpu.memory_space<vmem>>, %arg8: memref<8x1xf32, #tpu.memory_space<vmem>>, %arg9: memref<1x8x384xf32, #tpu.memory_space<vmem>>) attributes {dimension_semantics = [#tpu.dimension_semantics<parallel>], iteration_bounds = array<i64: 2>, scalar_prefetch = 0 : i64, scratch_operands = 0 : i64, tpu.core_type = #tpu.core_type<tc>, window_params = [{transform_indices = @transform_0, window_bounds = array<i64: 1, 8, 384>}, {pipeline_mode = #tpu.pipeline_mode<synchronous>, transform_indices = @transform_1, window_bounds = array<i64: 1, 384>}, {pipeline_mode = #tpu.pipeline_mode<synchronous>, transform_indices = @transform_2, window_bounds = array<i64: 8, 72>}, {pipeline_mode = #tpu.pipeline_mode<synchronous>, transform_indices = @transform_3, window_bounds = array<i64: 8, 72>}, {pipeline_mode = #tpu.pipeline_mode<synchronous>, transform_indices = @transform_4, window_bounds = array<i64: 8, 72>}, {pipeline_mode = #tpu.pipeline_mode<synchronous>, transform_indices = @transform_5, window_bounds = array<i64: 8, 1>}, {pipeline_mode = #tpu.pipeline_mode<synchronous>, transform_indices = @transform_6, window_bounds = array<i64: 8, 1>}, {pipeline_mode = #tpu.pipeline_mode<synchronous>, transform_indices = @transform_7, window_bounds = array<i64: 8, 1>}, {transform_indices = @transform_8, window_bounds = array<i64: 1, 8, 384>}]} {
    %c0 = arith.constant 0 : index
    %c0_0 = arith.constant 0 : index
    %c0_1 = arith.constant 0 : index
    %0 = vector.load %arg1[%c0, %c0_0, %c0_1] : memref<1x8x384xf32, #tpu.memory_space<vmem>>, vector<1x8x384xf32>
    %1 = vector.shape_cast %0 : vector<1x8x384xf32> to vector<8x384xf32>
    %c0_2 = arith.constant 0 : index
    %c0_3 = arith.constant 0 : index
    %2 = vector.load %arg2[%c0_2, %c0_3] : memref<1x384xf32, #tpu.memory_space<vmem>>, vector<1x384xf32>
    %3 = vector.shape_cast %2 : vector<1x384xf32> to vector<1x384xf32>
    %4 = vector.broadcast %3 : vector<1x384xf32> to vector<8x384xf32>
    %c19_i32 = arith.constant 19 : i32
    %5 = tpu.dynamic_rotate %1 by %c19_i32 dim 1 : vector<8x384xf32>, i32 -> vector<8x384xf32>
    %c18_i32 = arith.constant 18 : i32
    %6 = tpu.dynamic_rotate %1 by %c18_i32 dim 1 : vector<8x384xf32>, i32 -> vector<8x384xf32>
    %c17_i32 = arith.constant 17 : i32
    %7 = tpu.dynamic_rotate %1 by %c17_i32 dim 1 : vector<8x384xf32>, i32 -> vector<8x384xf32>
    %c1_i32 = arith.constant 1 : i32
    %8 = tpu.dynamic_rotate %1 by %c1_i32 dim 1 : vector<8x384xf32>, i32 -> vector<8x384xf32>
    %c383_i32 = arith.constant 383 : i32
    %9 = tpu.dynamic_rotate %1 by %c383_i32 dim 1 : vector<8x384xf32>, i32 -> vector<8x384xf32>
    %c367_i32 = arith.constant 367 : i32
    %10 = tpu.dynamic_rotate %1 by %c367_i32 dim 1 : vector<8x384xf32>, i32 -> vector<8x384xf32>
    %c366_i32 = arith.constant 366 : i32
    %11 = tpu.dynamic_rotate %1 by %c366_i32 dim 1 : vector<8x384xf32>, i32 -> vector<8x384xf32>
    %c365_i32 = arith.constant 365 : i32
    %12 = tpu.dynamic_rotate %1 by %c365_i32 dim 1 : vector<8x384xf32>, i32 -> vector<8x384xf32>
    %13 = tpu.concatenate %5, %6, %7, %8, %1, %9, %10, %11, %12 in 0 : vector<8x384xf32>, vector<8x384xf32>, vector<8x384xf32>, vector<8x384xf32>, vector<8x384xf32>, vector<8x384xf32>, vector<8x384xf32>, vector<8x384xf32>, vector<8x384xf32> -> vector<72x384xf32>
    %c0_4 = arith.constant 0 : index
    %c0_5 = arith.constant 0 : index
    %14 = vector.load %arg3[%c0_4, %c0_5] : memref<8x72xbf16, #tpu.memory_space<vmem>>, vector<8x72xbf16>
    %15 = arith.truncf %13 : vector<72x384xf32> to vector<72x384xbf16>
    %cst = arith.constant dense<0.000000e+00> : vector<8x384xf32>
    %16 = tpu.matmul %14, %15, %cst {dimension_numbers = #tpu.dot_dimension_numbers<[1], [0], [0], [1], [0, 0, 1, 1], [], []>} : vector<8x72xbf16>, vector<72x384xbf16>, vector<8x384xf32> -> vector<8x384xf32>
    %c0_6 = arith.constant 0 : index
    %c0_7 = arith.constant 0 : index
    %17 = vector.load %arg6[%c0_6, %c0_7] : memref<8x1xf32, #tpu.memory_space<vmem>>, vector<8x1xf32>
    %18 = vector.broadcast %17 : vector<8x1xf32> to vector<8x384xf32>
    %19 = arith.addf %16, %18 : vector<8x384xf32>
    %cst_8 = arith.constant 0.000000e+00 : f32
    %20 = vector.broadcast %cst_8 : f32 to vector<8x384xf32>
    %21 = arith.cmpf ogt, %19, %20 : vector<8x384xf32>
    %cst_9 = arith.constant 1.000000e-01 : f32
    %22 = vector.broadcast %cst_9 : f32 to vector<8x384xf32>
    %23 = arith.mulf %22, %19 : vector<8x384xf32>
    %24 = arith.select %21, %19, %23 : vector<8x384xi1>, vector<8x384xf32>
    %25 = arith.mulf %24, %4 : vector<8x384xf32>
    %c19_i32_10 = arith.constant 19 : i32
    %26 = tpu.dynamic_rotate %25 by %c19_i32_10 dim 1 : vector<8x384xf32>, i32 -> vector<8x384xf32>
    %c18_i32_11 = arith.constant 18 : i32
    %27 = tpu.dynamic_rotate %25 by %c18_i32_11 dim 1 : vector<8x384xf32>, i32 -> vector<8x384xf32>
    %c17_i32_12 = arith.constant 17 : i32
    %28 = tpu.dynamic_rotate %25 by %c17_i32_12 dim 1 : vector<8x384xf32>, i32 -> vector<8x384xf32>
    %c1_i32_13 = arith.constant 1 : i32
    %29 = tpu.dynamic_rotate %25 by %c1_i32_13 dim 1 : vector<8x384xf32>, i32 -> vector<8x384xf32>
    %c383_i32_14 = arith.constant 383 : i32
    %30 = tpu.dynamic_rotate %25 by %c383_i32_14 dim 1 : vector<8x384xf32>, i32 -> vector<8x384xf32>
    %c367_i32_15 = arith.constant 367 : i32
    %31 = tpu.dynamic_rotate %25 by %c367_i32_15 dim 1 : vector<8x384xf32>, i32 -> vector<8x384xf32>
    %c366_i32_16 = arith.constant 366 : i32
    %32 = tpu.dynamic_rotate %25 by %c366_i32_16 dim 1 : vector<8x384xf32>, i32 -> vector<8x384xf32>
    %c365_i32_17 = arith.constant 365 : i32
    %33 = tpu.dynamic_rotate %25 by %c365_i32_17 dim 1 : vector<8x384xf32>, i32 -> vector<8x384xf32>
    %34 = tpu.concatenate %26, %27, %28, %29, %25, %30, %31, %32, %33 in 0 : vector<8x384xf32>, vector<8x384xf32>, vector<8x384xf32>, vector<8x384xf32>, vector<8x384xf32>, vector<8x384xf32>, vector<8x384xf32>, vector<8x384xf32>, vector<8x384xf32> -> vector<72x384xf32>
    %c0_18 = arith.constant 0 : index
    %c0_19 = arith.constant 0 : index
    %35 = vector.load %arg4[%c0_18, %c0_19] : memref<8x72xbf16, #tpu.memory_space<vmem>>, vector<8x72xbf16>
    %36 = arith.truncf %34 : vector<72x384xf32> to vector<72x384xbf16>
    %cst_20 = arith.constant dense<0.000000e+00> : vector<8x384xf32>
    %37 = tpu.matmul %35, %36, %cst_20 {dimension_numbers = #tpu.dot_dimension_numbers<[1], [0], [0], [1], [0, 0, 1, 1], [], []>} : vector<8x72xbf16>, vector<72x384xbf16>, vector<8x384xf32> -> vector<8x384xf32>
    %c0_21 = arith.constant 0 : index
    %c0_22 = arith.constant 0 : index
    %38 = vector.load %arg7[%c0_21, %c0_22] : memref<8x1xf32, #tpu.memory_space<vmem>>, vector<8x1xf32>
    %39 = vector.broadcast %38 : vector<8x1xf32> to vector<8x384xf32>
    %40 = arith.addf %37, %39 : vector<8x384xf32>
    %cst_23 = arith.constant 0.000000e+00 : f32
    %41 = vector.broadcast %cst_23 : f32 to vector<8x384xf32>
    %42 = arith.cmpf ogt, %40, %41 : vector<8x384xf32>
    %cst_24 = arith.constant 1.000000e-01 : f32
    %43 = vector.broadcast %cst_24 : f32 to vector<8x384xf32>
    %44 = arith.mulf %43, %40 : vector<8x384xf32>
    %45 = arith.select %42, %40, %44 : vector<8x384xi1>, vector<8x384xf32>
    %46 = arith.mulf %45, %4 : vector<8x384xf32>
    %c19_i32_25 = arith.constant 19 : i32
    %47 = tpu.dynamic_rotate %46 by %c19_i32_25 dim 1 : vector<8x384xf32>, i32 -> vector<8x384xf32>
    %c18_i32_26 = arith.constant 18 : i32
    %48 = tpu.dynamic_rotate %46 by %c18_i32_26 dim 1 : vector<8x384xf32>, i32 -> vector<8x384xf32>
    %c17_i32_27 = arith.constant 17 : i32
    %49 = tpu.dynamic_rotate %46 by %c17_i32_27 dim 1 : vector<8x384xf32>, i32 -> vector<8x384xf32>
    %c1_i32_28 = arith.constant 1 : i32
    %50 = tpu.dynamic_rotate %46 by %c1_i32_28 dim 1 : vector<8x384xf32>, i32 -> vector<8x384xf32>
    %c383_i32_29 = arith.constant 383 : i32
    %51 = tpu.dynamic_rotate %46 by %c383_i32_29 dim 1 : vector<8x384xf32>, i32 -> vector<8x384xf32>
    %c367_i32_30 = arith.constant 367 : i32
    %52 = tpu.dynamic_rotate %46 by %c367_i32_30 dim 1 : vector<8x384xf32>, i32 -> vector<8x384xf32>
    %c366_i32_31 = arith.constant 366 : i32
    %53 = tpu.dynamic_rotate %46 by %c366_i32_31 dim 1 : vector<8x384xf32>, i32 -> vector<8x384xf32>
    %c365_i32_32 = arith.constant 365 : i32
    %54 = tpu.dynamic_rotate %46 by %c365_i32_32 dim 1 : vector<8x384xf32>, i32 -> vector<8x384xf32>
    %55 = tpu.concatenate %47, %48, %49, %50, %46, %51, %52, %53, %54 in 0 : vector<8x384xf32>, vector<8x384xf32>, vector<8x384xf32>, vector<8x384xf32>, vector<8x384xf32>, vector<8x384xf32>, vector<8x384xf32>, vector<8x384xf32>, vector<8x384xf32> -> vector<72x384xf32>
    %c0_33 = arith.constant 0 : index
    %c0_34 = arith.constant 0 : index
    %56 = vector.load %arg5[%c0_33, %c0_34] : memref<8x72xbf16, #tpu.memory_space<vmem>>, vector<8x72xbf16>
    %57 = arith.truncf %55 : vector<72x384xf32> to vector<72x384xbf16>
    %cst_35 = arith.constant dense<0.000000e+00> : vector<8x384xf32>
    %58 = tpu.matmul %56, %57, %cst_35 {dimension_numbers = #tpu.dot_dimension_numbers<[1], [0], [0], [1], [0, 0, 1, 1], [], []>} : vector<8x72xbf16>, vector<72x384xbf16>, vector<8x384xf32> -> vector<8x384xf32>
    %c0_36 = arith.constant 0 : index
    %c0_37 = arith.constant 0 : index
    %59 = vector.load %arg8[%c0_36, %c0_37] : memref<8x1xf32, #tpu.memory_space<vmem>>, vector<8x1xf32>
    %60 = vector.broadcast %59 : vector<8x1xf32> to vector<8x384xf32>
    %61 = arith.addf %58, %60 : vector<8x384xf32>
    %62 = arith.addf %61, %1 : vector<8x384xf32>
    %cst_38 = arith.constant 0.000000e+00 : f32
    %63 = vector.broadcast %cst_38 : f32 to vector<8x384xf32>
    %64 = arith.cmpf ogt, %62, %63 : vector<8x384xf32>
    %cst_39 = arith.constant 1.000000e-01 : f32
    %65 = vector.broadcast %cst_39 : f32 to vector<8x384xf32>
    %66 = arith.mulf %65, %62 : vector<8x384xf32>
    %67 = arith.select %64, %62, %66 : vector<8x384xi1>, vector<8x384xf32>
    %c0_40 = arith.constant 0 : index
    %c0_41 = arith.constant 0 : index
    %c0_42 = arith.constant 0 : index
    %68 = vector.load %arg9[%c0_40, %c0_41, %c0_42] : memref<1x8x384xf32, #tpu.memory_space<vmem>>, vector<1x8x384xf32>
    %69 = vector.shape_cast %68 : vector<1x8x384xf32> to vector<8x384xf32>
    %70 = vector.shape_cast %67 : vector<8x384xf32> to vector<1x8x384xf32>
    tpu.vector_store %arg9[%c0_40, %c0_41, %c0_42], %70 {strides = array<i32>} : memref<1x8x384xf32, #tpu.memory_space<vmem>>, vector<1x8x384xf32>,
    return
  }
  func.func @transform_0(%arg0: i32) -> (i32, i32, i32) {
    %c0_i32 = arith.constant 0 : i32
    %c0_i32_0 = arith.constant 0 : i32
    %c0_i32_1 = arith.constant 0 : i32
    return %arg0, %c0_i32, %c0_i32_0 : i32, i32, i32
  }
  func.func @transform_1(%arg0: i32) -> (i32, i32) {
    %c0_i32 = arith.constant 0 : i32
    %c0_i32_0 = arith.constant 0 : i32
    %c0_i32_1 = arith.constant 0 : i32
    return %c0_i32, %c0_i32_0 : i32, i32
  }
  func.func @transform_2(%arg0: i32) -> (i32, i32) {
    %c0_i32 = arith.constant 0 : i32
    %c0_i32_0 = arith.constant 0 : i32
    %c0_i32_1 = arith.constant 0 : i32
    return %c0_i32, %c0_i32_0 : i32, i32
  }
  func.func @transform_3(%arg0: i32) -> (i32, i32) {
    %c0_i32 = arith.constant 0 : i32
    %c0_i32_0 = arith.constant 0 : i32
    %c0_i32_1 = arith.constant 0 : i32
    return %c0_i32, %c0_i32_0 : i32, i32
  }
  func.func @transform_4(%arg0: i32) -> (i32, i32) {
    %c0_i32 = arith.constant 0 : i32
    %c0_i32_0 = arith.constant 0 : i32
    %c0_i32_1 = arith.constant 0 : i32
    return %c0_i32, %c0_i32_0 : i32, i32
  }
  func.func @transform_5(%arg0: i32) -> (i32, i32) {
    %c0_i32 = arith.constant 0 : i32
    %c0_i32_0 = arith.constant 0 : i32
    %c0_i32_1 = arith.constant 0 : i32
    return %c0_i32, %c0_i32_0 : i32, i32
  }
  func.func @transform_6(%arg0: i32) -> (i32, i32) {
    %c0_i32 = arith.constant 0 : i32
    %c0_i32_0 = arith.constant 0 : i32
    %c0_i32_1 = arith.constant 0 : i32
    return %c0_i32, %c0_i32_0 : i32, i32
  }
  func.func @transform_7(%arg0: i32) -> (i32, i32) {
    %c0_i32 = arith.constant 0 : i32
    %c0_i32_0 = arith.constant 0 : i32
    %c0_i32_1 = arith.constant 0 : i32
    return %c0_i32, %c0_i32_0 : i32, i32
  }
  func.func @transform_8(%arg0: i32) -> (i32, i32, i32) {
    %c0_i32 = arith.constant 0 : i32
    %c0_i32_0 = arith.constant 0 : i32
    %c0_i32_1 = arith.constant 0 : i32
    return %arg0, %c0_i32, %c0_i32_0 : i32, i32, i32
  }
}

</mosaic_0001>

<llo_original>
// kernel: tpu_custom_call.1
$region0: #{tpu_custom_call.1}
  #allocation0 [shape = 'u32[]', space=smem, size = 0x4, offset = 0x4, fixed_abs, tag = 'smem constant byte address 0x4 - core index']
  #allocation1 [shape = 'u32[144,128]{1,0:T(1,128)}', space=vmem, size = 0x12000, scoped, tag = 'internal scratch']
  %s0 = inlined_call_operand.hbm [shape: f32[2,8,384], index: 0, kind: input, shape index: {}]
  %s1 = inlined_call_operand.vmem [shape: f32[1,384], index: 1, kind: input, shape index: {}]
  %s2 = inlined_call_operand.vmem [shape: bf16[8,72], index: 2, kind: input, shape index: {}]
  %s3 = inlined_call_operand.vmem [shape: bf16[8,72], index: 3, kind: input, shape index: {}]
  %s4 = inlined_call_operand.vmem [shape: bf16[8,72], index: 4, kind: input, shape index: {}]
  %s5 = inlined_call_operand.vmem [shape: f32[8,1], index: 5, kind: input, shape index: {}]
  %s6 = inlined_call_operand.vmem [shape: f32[8,1], index: 6, kind: input, shape index: {}]
  %s7 = inlined_call_operand.vmem [shape: f32[8,1], index: 7, kind: input, shape index: {}]
  %s8 = inlined_call_operand.hbm [shape: f32[2,8,384], index: 8, kind: output, shape index: {}]
  %s9 = sld [smem:[#allocation0]]
  $region69: #{tpu_custom_call.1} parent=0
    _
  %s11 = ssub.s32 1, %s9
  %s12 = scalar_select 0, %s11, %s9
  $region1: #{tpu_custom_call.1} parent=0
    #allocation2 [shape = 'u8[24576]{0}', space=vmem, size = 0x6000, scoped, tag = 'input window, operand 0']
    #allocation3 [shape = 's32[2]{0}', space=sflag, size = 0x8, scoped, tag = 'scoped memory for tpu_custom_call.1']
    #allocation4 [shape = 's32[2]{0}', space=sflag, size = 0x8, scoped, tag = 'scoped memory for tpu_custom_call.1']
    #allocation5 [shape = 'u8[24576]{0}', space=vmem, size = 0x6000, scoped, tag = 'output window, operand 0']
    %13 = vsyncpa [#allocation3], 0
    %s14 = scalar_lea.sflag [#allocation3], 1
    %15 = vsyncpa %s14, 0
    %16 = vsyncpa [#allocation4], 0
    %s17 = scalar_lea.sflag [#allocation4], 1
    %18 = vsyncpa %s17, 0
    loop: start=0, step=1, limit=4
    $region2: #{tpu_custom_call.1} parent=1 // loop_pre_header
      _
    $region3: #{tpu_custom_call.1} parent=1 // loop_header
      %s20 = sphi 0, %s24
      %p21 = scmp.ge.s32.totalorder %s20, 4
      %s30 = sphi 0, %s32
      %s33 = sphi 0, %s30
      %s34 = sphi 0, %s33
      %s50 = sphi 0, %s34
      %s54 = sphi 0, %s54
      %s56 = sphi 0, %s54
      %s57 = sphi 0, %s56
      %s71 = sphi 0, %s57
      %s75 = sphi 0, %s75
      %s77 = sphi 0, %s75
      %s78 = sphi 0, %s77
      %s92 = sphi 0, %s78
      %s96 = sphi 0, %s96
      %s98 = sphi 0, %s96
      %s99 = sphi 0, %s98
      %s113 = sphi 0, %s99
      %s117 = sphi 0, %s117
      %s119 = sphi 0, %s117
      %s120 = sphi 0, %s119
      %s134 = sphi 0, %s120
      %s138 = sphi 0, %s138
      %s140 = sphi 0, %s138
      %s141 = sphi 0, %s140
      %s155 = sphi 0, %s141
      %s159 = sphi 0, %s159
      %s161 = sphi 0, %s159
      %s162 = sphi 0, %s161
      %s176 = sphi 0, %s162
      %s180 = sphi 0, %s180
      %s182 = sphi 0, %s180
      %s183 = sphi 0, %s182
      %s197 = sphi 0, %s183
      %s203 = sphi 0, %s205
      %s206 = sphi 0, %s203
      %s207 = sphi 0, %s206
      %s223 = sphi 0, %s207
    $region4: #{tpu_custom_call.1} parent=1 // loop_header_branch
      %23 = sbr.rel (%p21) target = $region8
    $region5: #{tpu_custom_call.1} parent=1 // loop_body
      %s25 = ssub.s32 %s20, 1
      %s26 = ssub.s32 %s20, 2
      %s27 = sadd.s32 %s20, 1
      %s28 = ssub.s32 %s20, %s27
      %p29 = scmp.eq.s32.totalorder %s28, 0
      %s31 = sadd.s32 %s30, 1
      %s32 = scalar_select %p29, %s30, %s31
      %p35 = pneg %p29
      %p36 = scmp.eq.s32.totalorder %s20, 1
      %p37 = por %p35, %p36
      %p38 = scmp.ne.s32.totalorder %s30, %s33
      %p39 = scmp.eq.s32.totalorder %s20, 0
      %p40 = por %p38, %p39
      %p41 = scmp.ne.s32.totalorder %s30, %s33
      %p42 = scmp.eq.s32.totalorder %s25, 1
      %p43 = por %p41, %p42
      %p44 = scmp.ne.s32.totalorder %s33, %s34
      %p45 = scmp.eq.s32.totalorder %s25, 0
      %p46 = por %p44, %p45
      %p47 = scmp.ne.s32.totalorder %s33, %s34
      %p48 = scmp.eq.s32.totalorder %s26, 1
      %p49 = por %p47, %p48
      %p51 = scmp.ne.s32.totalorder %s34, %s50
      %p52 = scmp.eq.s32.totalorder %s26, 0
      %p53 = por %p51, %p52
      %s55 = sadd.s32 %s54, 1
      %p58 = scmp.eq.s32.totalorder %s20, 1
      %p59 = scmp.ne.s32.totalorder %s54, %s56
      %p60 = scmp.eq.s32.totalorder %s20, 0
      %p61 = por %p59, %p60
      %p62 = scmp.ne.s32.totalorder %s54, %s56
      %p63 = scmp.eq.s32.totalorder %s25, 1
      %p64 = por %p62, %p63
      %p65 = scmp.ne.s32.totalorder %s56, %s57
      %p66 = scmp.eq.s32.totalorder %s25, 0
      %p67 = por %p65, %p66
      %p68 = scmp.ne.s32.totalorder %s56, %s57
      %p69 = scmp.eq.s32.totalorder %s26, 1
      %p70 = por %p68, %p69
      %p72 = scmp.ne.s32.totalorder %s57, %s71
      %p73 = scmp.eq.s32.totalorder %s26, 0
      %p74 = por %p72, %p73
      %s76 = sadd.s32 %s75, 1
      %p79 = scmp.eq.s32.totalorder %s20, 1
      %p80 = scmp.ne.s32.totalorder %s75, %s77
      %p81 = scmp.eq.s32.totalorder %s20, 0
      %p82 = por %p80, %p81
      %p83 = scmp.ne.s32.totalorder %s75, %s77
      %p84 = scmp.eq.s32.totalorder %s25, 1
      %p85 = por %p83, %p84
      %p86 = scmp.ne.s32.totalorder %s77, %s78
      %p87 = scmp.eq.s32.totalorder %s25, 0
      %p88 = por %p86, %p87
      %p89 = scmp.ne.s32.totalorder %s77, %s78
      %p90 = scmp.eq.s32.totalorder %s26, 1
      %p91 = por %p89, %p90
      %p93 = scmp.ne.s32.totalorder %s78, %s92
      %p94 = scmp.eq.s32.totalorder %s26, 0
      %p95 = por %p93, %p94
      %s97 = sadd.s32 %s96, 1
      %p100 = scmp.eq.s32.totalorder %s20, 1
      %p101 = scmp.ne.s32.totalorder %s96, %s98
      %p102 = scmp.eq.s32.totalorder %s20, 0
      %p103 = por %p101, %p102
      %p104 = scmp.ne.s32.totalorder %s96, %s98
      %p105 = scmp.eq.s32.totalorder %s25, 1
      %p106 = por %p104, %p105
      %p107 = scmp.ne.s32.totalorder %s98, %s99
      %p108 = scmp.eq.s32.totalorder %s25, 0
      %p109 = por %p107, %p108
      %p110 = scmp.ne.s32.totalorder %s98, %s99
      %p111 = scmp.eq.s32.totalorder %s26, 1
      %p112 = por %p110, %p111
      %p114 = scmp.ne.s32.totalorder %s99, %s113
      %p115 = scmp.eq.s32.totalorder %s26, 0
      %p116 = por %p114, %p115
      %s118 = sadd.s32 %s117, 1
      %p121 = scmp.eq.s32.totalorder %s20, 1
      %p122 = scmp.ne.s32.totalorder %s117, %s119
      %p123 = scmp.eq.s32.totalorder %s20, 0
      %p124 = por %p122, %p123
      %p125 = scmp.ne.s32.totalorder %s117, %s119
      %p126 = scmp.eq.s32.totalorder %s25, 1
      %p127 = por %p125, %p126
      %p128 = scmp.ne.s32.totalorder %s119, %s120
      %p129 = scmp.eq.s32.totalorder %s25, 0
      %p130 = por %p128, %p129
      %p131 = scmp.ne.s32.totalorder %s119, %s120
      %p132 = scmp.eq.s32.totalorder %s26, 1
      %p133 = por %p131, %p132
      %p135 = scmp.ne.s32.totalorder %s120, %s134
      %p136 = scmp.eq.s32.totalorder %s26, 0
      %p137 = por %p135, %p136
      %s139 = sadd.s32 %s138, 1
      %p142 = scmp.eq.s32.totalorder %s20, 1
      %p143 = scmp.ne.s32.totalorder %s138, %s140
      %p144 = scmp.eq.s32.totalorder %s20, 0
      %p145 = por %p143, %p144
      %p146 = scmp.ne.s32.totalorder %s138, %s140
      %p147 = scmp.eq.s32.totalorder %s25, 1
      %p148 = por %p146, %p147
      %p149 = scmp.ne.s32.totalorder %s140, %s141
      %p150 = scmp.eq.s32.totalorder %s25, 0
      %p151 = por %p149, %p150
      %p152 = scmp.ne.s32.totalorder %s140, %s141
      %p153 = scmp.eq.s32.totalorder %s26, 1
      %p154 = por %p152, %p153
      %p156 = scmp.ne.s32.totalorder %s141, %s155
      %p157 = scmp.eq.s32.totalorder %s26, 0
      %p158 = por %p156, %p157
      %s160 = sadd.s32 %s159, 1
      %p163 = scmp.eq.s32.totalorder %s20, 1
      %p164 = scmp.ne.s32.totalorder %s159, %s161
      %p165 = scmp.eq.s32.totalorder %s20, 0
      %p166 = por %p164, %p165
      %p167 = scmp.ne.s32.totalorder %s159, %s161
      %p168 = scmp.eq.s32.totalorder %s25, 1
      %p169 = por %p167, %p168
      %p170 = scmp.ne.s32.totalorder %s161, %s162
      %p171 = scmp.eq.s32.totalorder %s25, 0
      %p172 = por %p170, %p171
      %p173 = scmp.ne.s32.totalorder %s161, %s162
      %p174 = scmp.eq.s32.totalorder %s26, 1
      %p175 = por %p173, %p174
      %p177 = scmp.ne.s32.totalorder %s162, %s176
      %p178 = scmp.eq.s32.totalorder %s26, 0
      %p179 = por %p177, %p178
      %s181 = sadd.s32 %s180, 1
      %p184 = scmp.eq.s32.totalorder %s20, 1
      %p185 = scmp.ne.s32.totalorder %s180, %s182
      %p186 = scmp.eq.s32.totalorder %s20, 0
      %p187 = por %p185, %p186
      %p188 = scmp.ne.s32.totalorder %s180, %s182
      %p189 = scmp.eq.s32.totalorder %s25, 1
      %p190 = por %p188, %p189
      %p191 = scmp.ne.s32.totalorder %s182, %s183
      %p192 = scmp.eq.s32.totalorder %s25, 0
      %p193 = por %p191, %p192
      %p194 = scmp.ne.s32.totalorder %s182, %s183
      %p195 = scmp.eq.s32.totalorder %s26, 1
      %p196 = por %p194, %p195
      %p198 = scmp.ne.s32.totalorder %s183, %s197
      %p199 = scmp.eq.s32.totalorder %s26, 0
      %p200 = por %p198, %p199
      %s201 = ssub.s32 %s20, %s27
      %p202 = scmp.eq.s32.totalorder %s201, 0
      %s204 = sadd.s32 %s203, 1
      %s205 = scalar_select %p202, %s203, %s204
      %p208 = pneg %p202
      %p209 = scmp.eq.s32.totalorder %s20, 1
      %p210 = por %p208, %p209
      %p211 = scmp.ne.s32.totalorder %s203, %s206
      %p212 = scmp.eq.s32.totalorder %s20, 0
      %p213 = por %p211, %p212
      %p214 = scmp.ne.s32.totalorder %s203, %s206
      %p215 = scmp.eq.s32.totalorder %s25, 1
      %p216 = por %p214, %p215
      %p217 = scmp.ne.s32.totalorder %s206, %s207
      %p218 = scmp.eq.s32.totalorder %s25, 0
      %p219 = por %p217, %p218
      %p220 = scmp.ne.s32.totalorder %s206, %s207
      %p221 = scmp.eq.s32.totalorder %s26, 1
      %p222 = por %p220, %p221
      %p224 = scmp.ne.s32.totalorder %s207, %s223
      %p225 = scmp.eq.s32.totalorder %s26, 0
      %p226 = por %p224, %p225
      %p227 = scmp.le.s32.totalorder 1, %s20
      %p228 = scmp.lt.s32.totalorder %s20, 3
      %p229 = pnand %p227, %p228
      %p230 = pneg %p229
      // Predicated region
      $region9: #{tpu_custom_call.1} parent=5 // pred_check
        _
      $region10: #{tpu_custom_call.1} parent=5 // pred_check_branch
        %232 = sbr.rel (%p229) target = $region12
      $region11: #{tpu_custom_call.1} parent=5 // pred_region
        %s233 = ssub.s32 %s20, 1
        // Predicated region
        $region13: #{tpu_custom_call.1} parent=11 // pred_check
          %p234 = pneg %p67
        $region14: #{tpu_custom_call.1} parent=11 // pred_check_branch
          %236 = sbr.rel (%p234) target = $region16
        $region15: #{tpu_custom_call.1} parent=11 // pred_region
          _
        $region16: #{tpu_custom_call.1} parent=11 // pred_fallthru
          _
        // Predicated region
        $region17: #{tpu_custom_call.1} parent=11 // pred_check
          %p237 = pneg %p88
        $region18: #{tpu_custom_call.1} parent=11 // pred_check_branch
          %239 = sbr.rel (%p237) target = $region20
        $region19: #{tpu_custom_call.1} parent=11 // pred_region
          _
        $region20: #{tpu_custom_call.1} parent=11 // pred_fallthru
          _
        // Predicated region
        $region21: #{tpu_custom_call.1} parent=11 // pred_check
          %p240 = pneg %p109
        $region22: #{tpu_custom_call.1} parent=11 // pred_check_branch
          %242 = sbr.rel (%p240) target = $region24
        $region23: #{tpu_custom_call.1} parent=11 // pred_region
          _
        $region24: #{tpu_custom_call.1} parent=11 // pred_fallthru
          _
        // Predicated region
        $region25: #{tpu_custom_call.1} parent=11 // pred_check
          %p243 = pneg %p130
        $region26: #{tpu_custom_call.1} parent=11 // pred_check_branch
          %245 = sbr.rel (%p243) target = $region28
        $region27: #{tpu_custom_call.1} parent=11 // pred_region
          _
        $region28: #{tpu_custom_call.1} parent=11 // pred_fallthru
          _
        // Predicated region
        $region29: #{tpu_custom_call.1} parent=11 // pred_check
          %p246 = pneg %p151
        $region30: #{tpu_custom_call.1} parent=11 // pred_check_branch
          %248 = sbr.rel (%p246) target = $region32
        $region31: #{tpu_custom_call.1} parent=11 // pred_region
          _
        $region32: #{tpu_custom_call.1} parent=11 // pred_fallthru
          _
        // Predicated region
        $region33: #{tpu_custom_call.1} parent=11 // pred_check
          %p249 = pneg %p172
        $region34: #{tpu_custom_call.1} parent=11 // pred_check_branch
          %251 = sbr.rel (%p249) target = $region36
        $region35: #{tpu_custom_call.1} parent=11 // pred_region
          _
        $region36: #{tpu_custom_call.1} parent=11 // pred_fallthru
          _
        // Predicated region
        $region37: #{tpu_custom_call.1} parent=11 // pred_check
          %p252 = pneg %p193
        $region38: #{tpu_custom_call.1} parent=11 // pred_check_branch
          %254 = sbr.rel (%p252) target = $region40
        $region39: #{tpu_custom_call.1} parent=11 // pred_region
          _
        $region40: #{tpu_custom_call.1} parent=11 // pred_fallthru
          _
      $region12: #{tpu_custom_call.1} parent=5 // pred_fallthru
        _
      %p255 = scmp.lt.s32.totalorder %s20, 2
      // Predicated region
      $region41: #{tpu_custom_call.1} parent=5 // pred_check
        %p256 = pneg %p255
      $region42: #{tpu_custom_call.1} parent=5 // pred_check_branch
        %258 = sbr.rel (%p256) target = $region44
      $region43: #{tpu_custom_call.1} parent=5 // pred_region
        // Predicated region
        $region45: #{tpu_custom_call.1} parent=43 // pred_check
          %p259 = pneg %p40
        $region46: #{tpu_custom_call.1} parent=43 // pred_check_branch
          %261 = sbr.rel (%p259) target = $region48
        $region47: #{tpu_custom_call.1} parent=43 // pred_region
          %s262 = sand.u32 %s30, 1
          %s263 = scalar_lea.sflag [#allocation3], %s262
          %s264 = sand.u32 %s30, 1
          %s265 = smul.addr %s264, 24
          %s266 = scalar_lea.vmem [#allocation2], %s265
          %s268 = ssub.s32 384, 384
          %269 = vsyncadd %s263, %s268
          %s270 = smul.addr %s20, 3
          %s271 = smul.addr %s270, 128
          %s272 = scalar_lea.hbm %s0, %s271
          %s274 = sshll.u32 %s266, 4
          %s275 = int_to_ptr.vmem [resolvable:$true] %s274
          %277 = dma.hbm_to_vmem [thread:$0]  %s272, 384, %s275, %s263
        $region48: #{tpu_custom_call.1} parent=43 // pred_fallthru
          _
      $region44: #{tpu_custom_call.1} parent=5 // pred_fallthru
        _
      %p278 = scmp.le.s32.totalorder 1, %s20
      %p279 = scmp.lt.s32.totalorder %s20, 3
      %p280 = pnand %p278, %p279
      %p281 = pneg %p280
      // Predicated region
      $region49: #{tpu_custom_call.1} parent=5 // pred_check
        _
      $region50: #{tpu_custom_call.1} parent=5 // pred_check_branch
        %283 = sbr.rel (%p280) target = $region52
      $region51: #{tpu_custom_call.1} parent=5 // pred_region
        %s284 = ssub.s32 %s20, 1
        %s285 = sand.u32 %s33, 1
        %s286 = scalar_lea.sflag [#allocation3], %s285
        %s287 = sand.u32 %s33, 1
        %s288 = smul.addr %s287, 24
        %s289 = scalar_lea.vmem [#allocation2], %s288
        // Predicated region
        $region53: #{tpu_custom_call.1} parent=51 // pred_check
          %p290 = pneg %p46
        $region54: #{tpu_custom_call.1} parent=51 // pred_check_branch
          %292 = sbr.rel (%p290) target = $region56
        $region55: #{tpu_custom_call.1} parent=51 // pred_region
          %293 = dma.done %s286, 384
        $region56: #{tpu_custom_call.1} parent=51 // pred_fallthru
          _
        %s294 = sand.u32 %s33, 1
        %s295 = scalar_lea.sflag [#allocation3], %s294
        %s296 = sand.u32 %s33, 1
        %s297 = smul.addr %s296, 24
        %s298 = scalar_lea.vmem [#allocation2], %s297
        %p299 = pneg %p46
        %p300 = pneg %p43
        %p301 = pneg %p67
        %p302 = pneg %p64
        %p303 = pneg %p88
        %p304 = pneg %p85
        %p305 = pneg %p109
        %p306 = pneg %p106
        %p307 = pneg %p130
        %p308 = pneg %p127
        %p309 = pneg %p151
        %p310 = pneg %p148
        %p311 = pneg %p172
        %p312 = pneg %p169
        %p313 = pneg %p193
        %p314 = pneg %p190
        %p315 = pneg %p219
        %p316 = pneg %p216
        %s317 = sand.u32 %s206, 1
        %s318 = scalar_lea.sflag [#allocation4], %s317
        %s319 = sand.u32 %s206, 1
        %s320 = smul.addr %s319, 24
        %s321 = scalar_lea.vmem [#allocation5], %s320
        %v323 = vld [vmem:[%s289] sm:$0xff]
        %v324 = vld [vmem:[%s289 + $0x8] sm:$0xff]
        %v325 = vld [vmem:[%s289 + $0x10] sm:$0xff]
        %v326 = vld [vmem:[%s1] sm:$0x7]
        %v328 = vlaneseq
        %v329 = vshrl.u32 %v328, 7
        %v330 = vsub.s32 0, %v329
        %v331 = vrot.slane %v326, %v330
        %v332 = vlaneseq
        %v333 = vshrl.u32 %v332, 7
        %v334 = vsub.s32 1, %v333
        %v335 = vrot.slane %v326, %v334
        %v336 = vlaneseq
        %v337 = vshrl.u32 %v336, 7
        %v338 = vsub.s32 2, %v337
        %v339 = vrot.slane %v326, %v338
        %343 = vrot.lane.b32.xlu0 %v323, 19
        %v344 = vpop.permute.xlu0 %343
        %345 = vrot.lane.b32.xlu0 %v324, 19
        %v346 = vpop.permute.xlu0 %345
        %347 = vrot.lane.b32.xlu0 %v325, 19
        %v348 = vpop.permute.xlu0 %347
        %v349 = vlaneseq
        %v350 = vand.u32 %v349, 127
        %vm351 = vcmp.lt.s32.totalorder %v350, 19
        %v352 = vsel %vm351, %v346, %v348
        %v353 = vsel %vm351, %v344, %v346
        %v354 = vsel %vm351, %v348, %v344
        %355 = vrot.lane.b32.xlu0 %v323, 18
        %v356 = vpop.permute.xlu0 %355
        %357 = vrot.lane.b32.xlu0 %v324, 18
        %v358 = vpop.permute.xlu0 %357
        %359 = vrot.lane.b32.xlu0 %v325, 18
        %v360 = vpop.permute.xlu0 %359
        %vm361 = vcmp.lt.s32.totalorder %v350, 18
        %v362 = vsel %vm361, %v358, %v360
        %v363 = vsel %vm361, %v356, %v358
        %v364 = vsel %vm361, %v360, %v356
        %365 = vrot.lane.b32.xlu0 %v323, 17
        %v366 = vpop.permute.xlu0 %365
        %367 = vrot.lane.b32.xlu0 %v324, 17
        %v368 = vpop.permute.xlu0 %367
        %369 = vrot.lane.b32.xlu0 %v325, 17
        %v370 = vpop.permute.xlu0 %369
        %vm371 = vcmp.lt.s32.totalorder %v350, 17
        %v372 = vsel %vm371, %v368, %v370
        %v373 = vsel %vm371, %v366, %v368
        %v374 = vsel %vm371, %v370, %v366
        %375 = vrot.lane.b32.xlu0 %v323, 1
        %v376 = vpop.permute.xlu0 %375
        %377 = vrot.lane.b32.xlu0 %v324, 1
        %v378 = vpop.permute.xlu0 %377
        %379 = vrot.lane.b32.xlu0 %v325, 1
        %v380 = vpop.permute.xlu0 %379
        %vm381 = vcmp.lt.s32.totalorder %v350, 1
        %v382 = vsel %vm381, %v378, %v380
        %v383 = vsel %vm381, %v376, %v378
        %v384 = vsel %vm381, %v380, %v376
        %385 = vrot.lane.b32.xlu0 %v323, 127
        %v386 = vpop.permute.xlu0 %385
        %387 = vrot.lane.b32.xlu0 %v324, 127
        %v388 = vpop.permute.xlu0 %387
        %389 = vrot.lane.b32.xlu0 %v325, 127
        %v390 = vpop.permute.xlu0 %389
        %vm391 = vcmp.lt.s32.totalorder %v350, 127
        %v392 = vsel %vm391, %v388, %v390
        %v393 = vsel %vm391, %v386, %v388
        %v394 = vsel %vm391, %v390, %v386
        %395 = vrot.lane.b32.xlu0 %v323, 111
        %v396 = vpop.permute.xlu0 %395
        %397 = vrot.lane.b32.xlu0 %v324, 111
        %v398 = vpop.permute.xlu0 %397
        %399 = vrot.lane.b32.xlu0 %v325, 111
        %v400 = vpop.permute.xlu0 %399
        %vm401 = vcmp.lt.s32.totalorder %v350, 111
        %v402 = vsel %vm401, %v398, %v400
        %v403 = vsel %vm401, %v396, %v398
        %v404 = vsel %vm401, %v400, %v396
        %405 = vrot.lane.b32.xlu0 %v323, 110
        %v406 = vpop.permute.xlu0 %405
        %407 = vrot.lane.b32.xlu0 %v324, 110
        %v408 = vpop.permute.xlu0 %407
        %409 = vrot.lane.b32.xlu0 %v325, 110
        %v410 = vpop.permute.xlu0 %409
        %vm411 = vcmp.lt.s32.totalorder %v350, 110
        %v412 = vsel %vm411, %v408, %v410
        %v413 = vsel %vm411, %v406, %v408
        %v414 = vsel %vm411, %v410, %v406
        %415 = vrot.lane.b32.xlu0 %v323, 109
        %v416 = vpop.permute.xlu0 %415
        %417 = vrot.lane.b32.xlu0 %v324, 109
        %v418 = vpop.permute.xlu0 %417
        %419 = vrot.lane.b32.xlu0 %v325, 109
        %v420 = vpop.permute.xlu0 %419
        %vm421 = vcmp.lt.s32.totalorder %v350, 109
        %v422 = vsel %vm421, %v418, %v420
        %v423 = vsel %vm421, %v416, %v418
        %v424 = vsel %vm421, %v420, %v416
        %v425 = vld [vmem:[%s2] sm:$0xf]
        %v426 = vpack.c.bf16 %v364, %v354
        %v427 = vpack.c.bf16 %v363, %v353
        %v428 = vpack.c.bf16 %v362, %v352
        %v429 = vpack.c.bf16 %v384, %v374
        %v430 = vpack.c.bf16 %v383, %v373
        %v431 = vpack.c.bf16 %v382, %v372
        %v432 = vpack.c.bf16 %v393, %v323
        %v433 = vpack.c.bf16 %v392, %v324
        %v434 = vpack.c.bf16 %v394, %v325
        %v435 = vpack.c.bf16 %v413, %v403
        %v436 = vpack.c.bf16 %v412, %v402
        %v437 = vpack.c.bf16 %v414, %v404
        %v438 = vpack.c.bf16 %v423, %v423
        %v439 = vpack.c.bf16 %v422, %v422
        %v440 = vpack.c.bf16 %v424, %v424
        %v441 = vld [vmem:[%s5] sm:$0xff]
        %443 = vset.pattern.permute.xlu0 0
        %444 = vperm.xlu0 %443, %v441
        %v445 = vpop.permute.xlu0 %444
        %vm447 = vcmask 588800
        %v449 = vsel %vm447, %v425, 0
        %vm451 = vcmask 1043456
        %v453 = vsel %vm451, %v438, 0
        %v456 = vsel %vm451, %v439, 0
        %v459 = vsel %vm451, %v440, 0
        %461 = vmatprep.subr.bf16.mxu0 %v427
        %462 = vmatpush1.bf16.msra.mxu0 %v426
        %463 = vmatprep.subr.bf16.mxu0 %v430
        %464 = vmatpush1.bf16.msra.mxu0 %v429
        %465 = vmatprep.subr.bf16.mxu0 %v433
        %466 = vmatpush1.bf16.msra.mxu0 %v432
        %467 = vmatprep.subr.bf16.mxu0 %v436
        %468 = vmatpush1.bf16.msra.mxu0 %v435
        %469 = vmatprep.subr.bf16.mxu0 %v456
        %470 = vmatpush1.bf16.msra.mxu0 %v453
        %471 = vmatprep.subr.bf16.mxu0 0
        %472 = vmatpush1.bf16.msra.mxu0 0
        %473 = vmatprep.subr.bf16.mxu0 0
        %474 = vmatpush1.bf16.msra.mxu0 0
        %475 = vmatprep.subr.bf16.mxu0 0
        %476 = vmatpush1.bf16.msra.mxu0 0
        %477 = vmatprep.subr.bf16.mxu0 0
        %478 = vmatpush1.bf16.msra.mxu0 0
        %479 = vmatprep.subr.bf16.mxu0 0
        %480 = vmatpush1.bf16.msra.mxu0 0
        %481 = vmatprep.subr.bf16.mxu0 0
        %482 = vmatpush1.bf16.msra.mxu0 0
        %483 = vmatprep.subr.bf16.mxu0 0
        %484 = vmatpush1.bf16.msra.mxu0 0
        %485 = vmatprep.subr.bf16.mxu0 0
        %486 = vmatpush1.bf16.msra.mxu0 0
        %487 = vmatprep.subr.bf16.mxu0 0
        %488 = vmatpush1.bf16.msra.mxu0 0
        %489 = vmatprep.subr.bf16.mxu0 0
        %490 = vmatpush1.bf16.msra.mxu0 0
        %491 = vmatprep.subr.bf16.mxu0 0
        %492 = vmatpush1.bf16.msra.mxu0 0
        %493 = vmatprep.mubr.bf16.mxu0 0
        %494 = vmatmul.mubr.bf16.gmra.mrb[0].mxu0 %v449
        %v495 = vpop.f32.mrb[0].mxu0
        %v496 = vadd.f32 %v445, %v495
        %v497 = vpop.f32.mrb[0].mxu0
        %v498 = vadd.f32 %v445, %v497
        %v499 = vpop.f32.mrb[0].mxu0
        %v500 = vpop.f32.mrb[0].mxu0
        %501 = vdwg.mxu0
        %502 = vmatprep.subr.bf16.mxu0 0
        %503 = vmatpush1.bf16.msra.mxu0 %v428
        %504 = vmatprep.subr.bf16.mxu0 0
        %505 = vmatpush1.bf16.msra.mxu0 %v431
        %506 = vmatprep.subr.bf16.mxu0 0
        %507 = vmatpush1.bf16.msra.mxu0 %v434
        %508 = vmatprep.subr.bf16.mxu0 0
        %509 = vmatpush1.bf16.msra.mxu0 %v437
        %510 = vmatprep.subr.bf16.mxu0 0
        %511 = vmatpush1.bf16.msra.mxu0 %v459
        %512 = vmatprep.subr.bf16.mxu0 0
        %513 = vmatpush1.bf16.msra.mxu0 0
        %514 = vmatprep.subr.bf16.mxu0 0
        %515 = vmatpush1.bf16.msra.mxu0 0
        %516 = vmatprep.subr.bf16.mxu0 0
        %517 = vmatpush1.bf16.msra.mxu0 0
        %518 = vmatprep.subr.bf16.mxu0 0
        %519 = vmatpush1.bf16.msra.mxu0 0
        %520 = vmatprep.subr.bf16.mxu0 0
        %521 = vmatpush1.bf16.msra.mxu0 0
        %522 = vmatprep.subr.bf16.mxu0 0
        %523 = vmatpush1.bf16.msra.mxu0 0
        %524 = vmatprep.subr.bf16.mxu0 0
        %525 = vmatpush1.bf16.msra.mxu0 0
        %526 = vmatprep.subr.bf16.mxu0 0
        %527 = vmatpush1.bf16.msra.mxu0 0
        %528 = vmatprep.subr.bf16.mxu0 0
        %529 = vmatpush1.bf16.msra.mxu0 0
        %530 = vmatprep.subr.bf16.mxu0 0
        %531 = vmatpush1.bf16.msra.mxu0 0
        %532 = vmatprep.subr.bf16.mxu0 0
        %533 = vmatpush1.bf16.msra.mxu0 0
        %534 = vmatprep.mubr.bf16.mxu0 0
        %535 = vmatmul.mubr.bf16.gmra.mrb[0].mxu0 %v449
        %v536 = vpop.f32.mrb[0].mxu0
        %v537 = vadd.f32 %v445, %v536
        %v538 = vpop.f32.mrb[0].mxu0
        %v539 = vpop.f32.mrb[0].mxu0
        %v540 = vpop.f32.mrb[0].mxu0
        %541 = vdwg.mxu0
        %vm542 = vcmp.gt.f32.partialorder %v496, 0.0
        %vm543 = vcmp.gt.f32.partialorder %v498, 0.0
        %vm544 = vcmp.gt.f32.partialorder %v537, 0.0
        %v545 = vmul.f32 %v496, 0.1
        %v546 = vmul.f32 %v498, 0.1
        %v547 = vmul.f32 %v537, 0.1
        %v548 = vsel %vm542, %v496, %v545
        %v549 = vsel %vm543, %v498, %v546
        %v550 = vsel %vm544, %v537, %v547
        %v551 = vmul.f32 %v548, %v331
        %v552 = vmul.f32 %v549, %v335
        %v553 = vmul.f32 %v550, %v339
        %554 = vrot.lane.b32.xlu0 %v551, 19
        %v555 = vpop.permute.xlu0 %554
        %556 = vrot.lane.b32.xlu0 %v552, 19
        %v557 = vpop.permute.xlu0 %556
        %558 = vrot.lane.b32.xlu0 %v553, 19
        %v559 = vpop.permute.xlu0 %558
        %v560 = vsel %vm351, %v557, %v559
        %v561 = vsel %vm351, %v555, %v557
        %v562 = vsel %vm351, %v559, %v555
        %563 = vrot.lane.b32.xlu0 %v551, 18
        %v564 = vpop.permute.xlu0 %563
        %565 = vrot.lane.b32.xlu0 %v552, 18
        %v566 = vpop.permute.xlu0 %565
        %567 = vrot.lane.b32.xlu0 %v553, 18
        %v568 = vpop.permute.xlu0 %567
        %v569 = vsel %vm361, %v566, %v568
        %v570 = vsel %vm361, %v564, %v566
        %v571 = vsel %vm361, %v568, %v564
        %572 = vrot.lane.b32.xlu0 %v551, 17
        %v573 = vpop.permute.xlu0 %572
        %574 = vrot.lane.b32.xlu0 %v552, 17
        %v575 = vpop.permute.xlu0 %574
        %576 = vrot.lane.b32.xlu0 %v553, 17
        %v577 = vpop.permute.xlu0 %576
        %v578 = vsel %vm371, %v575, %v577
        %v579 = vsel %vm371, %v573, %v575
        %v580 = vsel %vm371, %v577, %v573
        %581 = vrot.lane.b32.xlu0 %v551, 1
        %v582 = vpop.permute.xlu0 %581
        %583 = vrot.lane.b32.xlu0 %v552, 1
        %v584 = vpop.permute.xlu0 %583
        %585 = vrot.lane.b32.xlu0 %v553, 1
        %v586 = vpop.permute.xlu0 %585
        %v587 = vsel %vm381, %v584, %v586
        %v588 = vsel %vm381, %v582, %v584
        %v589 = vsel %vm381, %v586, %v582
        %590 = vrot.lane.b32.xlu0 %v551, 127
        %v591 = vpop.permute.xlu0 %590
        %592 = vrot.lane.b32.xlu0 %v552, 127
        %v593 = vpop.permute.xlu0 %592
        %594 = vrot.lane.b32.xlu0 %v553, 127
        %v595 = vpop.permute.xlu0 %594
        %v596 = vsel %vm391, %v593, %v595
        %v597 = vsel %vm391, %v591, %v593
        %v598 = vsel %vm391, %v595, %v591
        %599 = vrot.lane.b32.xlu0 %v551, 111
        %v600 = vpop.permute.xlu0 %599
        %601 = vrot.lane.b32.xlu0 %v552, 111
        %v602 = vpop.permute.xlu0 %601
        %603 = vrot.lane.b32.xlu0 %v553, 111
        %v604 = vpop.permute.xlu0 %603
        %v605 = vsel %vm401, %v602, %v604
        %v606 = vsel %vm401, %v600, %v602
        %v607 = vsel %vm401, %v604, %v600
        %608 = vrot.lane.b32.xlu0 %v551, 110
        %v609 = vpop.permute.xlu0 %608
        %610 = vrot.lane.b32.xlu0 %v552, 110
        %v611 = vpop.permute.xlu0 %610
        %612 = vrot.lane.b32.xlu0 %v553, 110
        %v613 = vpop.permute.xlu0 %612
        %v614 = vsel %vm411, %v611, %v613
        %v615 = vsel %vm411, %v609, %v611
        %v616 = vsel %vm411, %v613, %v609
        %617 = vrot.lane.b32.xlu0 %v551, 109
        %v618 = vpop.permute.xlu0 %617
        %619 = vrot.lane.b32.xlu0 %v552, 109
        %v620 = vpop.permute.xlu0 %619
        %621 = vrot.lane.b32.xlu0 %v553, 109
        %v622 = vpop.permute.xlu0 %621
        %v623 = vsel %vm421, %v620, %v622
        %v624 = vsel %vm421, %v618, %v620
        %v625 = vsel %vm421, %v622, %v618
        %v626 = vld [vmem:[%s3] sm:$0xf]
        %v627 = vpack.c.bf16 %v571, %v562
        %v628 = vpack.c.bf16 %v570, %v561
        %v629 = vpack.c.bf16 %v569, %v560
        %v630 = vpack.c.bf16 %v589, %v580
        %v631 = vpack.c.bf16 %v588, %v579
        %v632 = vpack.c.bf16 %v587, %v578
        %v633 = vpack.c.bf16 %v597, %v551
        %v634 = vpack.c.bf16 %v596, %v552
        %v635 = vpack.c.bf16 %v598, %v553
        %v636 = vpack.c.bf16 %v615, %v606
        %v637 = vpack.c.bf16 %v614, %v605
        %v638 = vpack.c.bf16 %v616, %v607
        %v639 = vpack.c.bf16 %v624, %v624
        %v640 = vpack.c.bf16 %v623, %v623
        %v641 = vpack.c.bf16 %v625, %v625
        %v642 = vld [vmem:[%s6] sm:$0xff]
        %644 = vset.pattern.permute.xlu0 0
        %645 = vperm.xlu0 %644, %v642
        %v646 = vpop.permute.xlu0 %645
        %v649 = vsel %vm447, %v626, 0
        %v652 = vsel %vm451, %v639, 0
        %v655 = vsel %vm451, %v640, 0
        %v658 = vsel %vm451, %v641, 0
        %660 = vmatprep.subr.bf16.mxu0 %v628
        %661 = vmatpush1.bf16.msra.mxu0 %v627
        %662 = vmatprep.subr.bf16.mxu0 %v631
        %663 = vmatpush1.bf16.msra.mxu0 %v630
        %664 = vmatprep.subr.bf16.mxu0 %v634
        %665 = vmatpush1.bf16.msra.mxu0 %v633
        %666 = vmatprep.subr.bf16.mxu0 %v637
        %667 = vmatpush1.bf16.msra.mxu0 %v636
        %668 = vmatprep.subr.bf16.mxu0 %v655
        %669 = vmatpush1.bf16.msra.mxu0 %v652
        %670 = vmatprep.subr.bf16.mxu0 0
        %671 = vmatpush1.bf16.msra.mxu0 0
        %672 = vmatprep.subr.bf16.mxu0 0
        %673 = vmatpush1.bf16.msra.mxu0 0
        %674 = vmatprep.subr.bf16.mxu0 0
        %675 = vmatpush1.bf16.msra.mxu0 0
        %676 = vmatprep.subr.bf16.mxu0 0
        %677 = vmatpush1.bf16.msra.mxu0 0
        %678 = vmatprep.subr.bf16.mxu0 0
        %679 = vmatpush1.bf16.msra.mxu0 0
        %680 = vmatprep.subr.bf16.mxu0 0
        %681 = vmatpush1.bf16.msra.mxu0 0
        %682 = vmatprep.subr.bf16.mxu0 0
        %683 = vmatpush1.bf16.msra.mxu0 0
        %684 = vmatprep.subr.bf16.mxu0 0
        %685 = vmatpush1.bf16.msra.mxu0 0
        %686 = vmatprep.subr.bf16.mxu0 0
        %687 = vmatpush1.bf16.msra.mxu0 0
        %688 = vmatprep.subr.bf16.mxu0 0
        %689 = vmatpush1.bf16.msra.mxu0 0
        %690 = vmatprep.subr.bf16.mxu0 0
        %691 = vmatpush1.bf16.msra.mxu0 0
        %692 = vmatprep.mubr.bf16.mxu0 0
        %693 = vmatmul.mubr.bf16.gmra.mrb[0].mxu0 %v649
        %v694 = vpop.f32.mrb[0].mxu0
        %v695 = vadd.f32 %v646, %v694
        %v696 = vpop.f32.mrb[0].mxu0
        %v697 = vadd.f32 %v646, %v696
        %v698 = vpop.f32.mrb[0].mxu0
        %v699 = vpop.f32.mrb[0].mxu0
        %700 = vdwg.mxu0
        %701 = vmatprep.subr.bf16.mxu0 0
        %702 = vmatpush1.bf16.msra.mxu0 %v629
        %703 = vmatprep.subr.bf16.mxu0 0
        %704 = vmatpush1.bf16.msra.mxu0 %v632
        %705 = vmatprep.subr.bf16.mxu0 0
        %706 = vmatpush1.bf16.msra.mxu0 %v635
        %707 = vmatprep.subr.bf16.mxu0 0
        %708 = vmatpush1.bf16.msra.mxu0 %v638
        %709 = vmatprep.subr.bf16.mxu0 0
        %710 = vmatpush1.bf16.msra.mxu0 %v658
        %711 = vmatprep.subr.bf16.mxu0 0
        %712 = vmatpush1.bf16.msra.mxu0 0
        %713 = vmatprep.subr.bf16.mxu0 0
        %714 = vmatpush1.bf16.msra.mxu0 0
        %715 = vmatprep.subr.bf16.mxu0 0
        %716 = vmatpush1.bf16.msra.mxu0 0
        %717 = vmatprep.subr.bf16.mxu0 0
        %718 = vmatpush1.bf16.msra.mxu0 0
        %719 = vmatprep.subr.bf16.mxu0 0
        %720 = vmatpush1.bf16.msra.mxu0 0
        %721 = vmatprep.subr.bf16.mxu0 0
        %722 = vmatpush1.bf16.msra.mxu0 0
        %723 = vmatprep.subr.bf16.mxu0 0
        %724 = vmatpush1.bf16.msra.mxu0 0
        %725 = vmatprep.subr.bf16.mxu0 0
        %726 = vmatpush1.bf16.msra.mxu0 0
        %727 = vmatprep.subr.bf16.mxu0 0
        %728 = vmatpush1.bf16.msra.mxu0 0
        %729 = vmatprep.subr.bf16.mxu0 0
        %730 = vmatpush1.bf16.msra.mxu0 0
        %731 = vmatprep.subr.bf16.mxu0 0
        %732 = vmatpush1.bf16.msra.mxu0 0
        %733 = vmatprep.mubr.bf16.mxu0 0
        %734 = vmatmul.mubr.bf16.gmra.mrb[0].mxu0 %v649
        %v735 = vpop.f32.mrb[0].mxu0
        %v736 = vadd.f32 %v646, %v735
        %v737 = vpop.f32.mrb[0].mxu0
        %v738 = vpop.f32.mrb[0].mxu0
        %v739 = vpop.f32.mrb[0].mxu0
        %740 = vdwg.mxu0
        %vm741 = vcmp.gt.f32.partialorder %v695, 0.0
        %vm742 = vcmp.gt.f32.partialorder %v697, 0.0
        %vm743 = vcmp.gt.f32.partialorder %v736, 0.0
        %v744 = vmul.f32 %v695, 0.1
        %v745 = vmul.f32 %v697, 0.1
        %v746 = vmul.f32 %v736, 0.1
        %v747 = vsel %vm741, %v695, %v744
        %v748 = vsel %vm742, %v697, %v745
        %v749 = vsel %vm743, %v736, %v746
        %v750 = vmul.f32 %v747, %v331
        %v751 = vmul.f32 %v748, %v335
        %v752 = vmul.f32 %v749, %v339
        %753 = vrot.lane.b32.xlu0 %v750, 19
        %v754 = vpop.permute.xlu0 %753
        %755 = vrot.lane.b32.xlu0 %v751, 19
        %v756 = vpop.permute.xlu0 %755
        %757 = vrot.lane.b32.xlu0 %v752, 19
        %v758 = vpop.permute.xlu0 %757
        %v759 = vsel %vm351, %v756, %v758
        %v760 = vsel %vm351, %v754, %v756
        %v761 = vsel %vm351, %v758, %v754
        %762 = vrot.lane.b32.xlu0 %v750, 18
        %v763 = vpop.permute.xlu0 %762
        %764 = vrot.lane.b32.xlu0 %v751, 18
        %v765 = vpop.permute.xlu0 %764
        %766 = vrot.lane.b32.xlu0 %v752, 18
        %v767 = vpop.permute.xlu0 %766
        %v768 = vsel %vm361, %v765, %v767
        %v769 = vsel %vm361, %v763, %v765
        %v770 = vsel %vm361, %v767, %v763
        %771 = vrot.lane.b32.xlu0 %v750, 17
        %v772 = vpop.permute.xlu0 %771
        %773 = vrot.lane.b32.xlu0 %v751, 17
        %v774 = vpop.permute.xlu0 %773
        %775 = vrot.lane.b32.xlu0 %v752, 17
        %v776 = vpop.permute.xlu0 %775
        %v777 = vsel %vm371, %v774, %v776
        %v778 = vsel %vm371, %v772, %v774
        %v779 = vsel %vm371, %v776, %v772
        %780 = vrot.lane.b32.xlu0 %v750, 1
        %v781 = vpop.permute.xlu0 %780
        %782 = vrot.lane.b32.xlu0 %v751, 1
        %v783 = vpop.permute.xlu0 %782
        %784 = vrot.lane.b32.xlu0 %v752, 1
        %v785 = vpop.permute.xlu0 %784
        %v786 = vsel %vm381, %v783, %v785
        %v787 = vsel %vm381, %v781, %v783
        %v788 = vsel %vm381, %v785, %v781
        %789 = vrot.lane.b32.xlu0 %v750, 127
        %v790 = vpop.permute.xlu0 %789
        %791 = vrot.lane.b32.xlu0 %v751, 127
        %v792 = vpop.permute.xlu0 %791
        %793 = vrot.lane.b32.xlu0 %v752, 127
        %v794 = vpop.permute.xlu0 %793
        %v795 = vsel %vm391, %v792, %v794
        %v796 = vsel %vm391, %v790, %v792
        %v797 = vsel %vm391, %v794, %v790
        %798 = vrot.lane.b32.xlu0 %v750, 111
        %v799 = vpop.permute.xlu0 %798
        %800 = vrot.lane.b32.xlu0 %v751, 111
        %v801 = vpop.permute.xlu0 %800
        %802 = vrot.lane.b32.xlu0 %v752, 111
        %v803 = vpop.permute.xlu0 %802
        %v804 = vsel %vm401, %v801, %v803
        %v805 = vsel %vm401, %v799, %v801
        %v806 = vsel %vm401, %v803, %v799
        %807 = vrot.lane.b32.xlu0 %v750, 110
        %v808 = vpop.permute.xlu0 %807
        %809 = vrot.lane.b32.xlu0 %v751, 110
        %v810 = vpop.permute.xlu0 %809
        %811 = vrot.lane.b32.xlu0 %v752, 110
        %v812 = vpop.permute.xlu0 %811
        %v813 = vsel %vm411, %v810, %v812
        %v814 = vsel %vm411, %v808, %v810
        %v815 = vsel %vm411, %v812, %v808
        %816 = vrot.lane.b32.xlu0 %v750, 109
        %v817 = vpop.permute.xlu0 %816
        %818 = vrot.lane.b32.xlu0 %v751, 109
        %v819 = vpop.permute.xlu0 %818
        %820 = vrot.lane.b32.xlu0 %v752, 109
        %v821 = vpop.permute.xlu0 %820
        %v822 = vsel %vm421, %v819, %v821
        %v823 = vsel %vm421, %v817, %v819
        %v824 = vsel %vm421, %v821, %v817
        %v825 = vld [vmem:[%s4] sm:$0xf]
        %v826 = vpack.c.bf16 %v770, %v761
        %v827 = vpack.c.bf16 %v769, %v760
        %v828 = vpack.c.bf16 %v768, %v759
        %v829 = vpack.c.bf16 %v788, %v779
        %v830 = vpack.c.bf16 %v787, %v778
        %v831 = vpack.c.bf16 %v786, %v777
        %v832 = vpack.c.bf16 %v796, %v750
        %v833 = vpack.c.bf16 %v795, %v751
        %v834 = vpack.c.bf16 %v797, %v752
        %v835 = vpack.c.bf16 %v814, %v805
        %v836 = vpack.c.bf16 %v813, %v804
        %v837 = vpack.c.bf16 %v815, %v806
        %v838 = vpack.c.bf16 %v823, %v823
        %v839 = vpack.c.bf16 %v822, %v822
        %v840 = vpack.c.bf16 %v824, %v824
        %v841 = vld [vmem:[%s7] sm:$0xff]
        %843 = vset.pattern.permute.xlu0 0
        %844 = vperm.xlu0 %843, %v841
        %v845 = vpop.permute.xlu0 %844
        %v848 = vsel %vm447, %v825, 0
        %v851 = vsel %vm451, %v838, 0
        %v854 = vsel %vm451, %v839, 0
        %v857 = vsel %vm451, %v840, 0
        %859 = vmatprep.subr.bf16.mxu0 %v827
        %860 = vmatpush1.bf16.msra.mxu0 %v826
        %861 = vmatprep.subr.bf16.mxu0 %v830
        %862 = vmatpush1.bf16.msra.mxu0 %v829
        %863 = vmatprep.subr.bf16.mxu0 %v833
        %864 = vmatpush1.bf16.msra.mxu0 %v832
        %865 = vmatprep.subr.bf16.mxu0 %v836
        %866 = vmatpush1.bf16.msra.mxu0 %v835
        %867 = vmatprep.subr.bf16.mxu0 %v854
        %868 = vmatpush1.bf16.msra.mxu0 %v851
        %869 = vmatprep.subr.bf16.mxu0 0
        %870 = vmatpush1.bf16.msra.mxu0 0
        %871 = vmatprep.subr.bf16.mxu0 0
        %872 = vmatpush1.bf16.msra.mxu0 0
        %873 = vmatprep.subr.bf16.mxu0 0
        %874 = vmatpush1.bf16.msra.mxu0 0
        %875 = vmatprep.subr.bf16.mxu0 0
        %876 = vmatpush1.bf16.msra.mxu0 0
        %877 = vmatprep.subr.bf16.mxu0 0
        %878 = vmatpush1.bf16.msra.mxu0 0
        %879 = vmatprep.subr.bf16.mxu0 0
        %880 = vmatpush1.bf16.msra.mxu0 0
        %881 = vmatprep.subr.bf16.mxu0 0
        %882 = vmatpush1.bf16.msra.mxu0 0
        %883 = vmatprep.subr.bf16.mxu0 0
        %884 = vmatpush1.bf16.msra.mxu0 0
        %885 = vmatprep.subr.bf16.mxu0 0
        %886 = vmatpush1.bf16.msra.mxu0 0
        %887 = vmatprep.subr.bf16.mxu0 0
        %888 = vmatpush1.bf16.msra.mxu0 0
        %889 = vmatprep.subr.bf16.mxu0 0
        %890 = vmatpush1.bf16.msra.mxu0 0
        %891 = vmatprep.mubr.bf16.mxu0 0
        %892 = vmatmul.mubr.bf16.gmra.mrb[0].mxu0 %v848
        %v893 = vpop.f32.mrb[0].mxu0
        %v894 = vadd.f32 %v845, %v893
        %v895 = vpop.f32.mrb[0].mxu0
        %v896 = vadd.f32 %v845, %v895
        %v897 = vpop.f32.mrb[0].mxu0
        %v898 = vpop.f32.mrb[0].mxu0
        %899 = vdwg.mxu0
        %900 = vmatprep.subr.bf16.mxu0 0
        %901 = vmatpush1.bf16.msra.mxu0 %v828
        %902 = vmatprep.subr.bf16.mxu0 0
        %903 = vmatpush1.bf16.msra.mxu0 %v831
        %904 = vmatprep.subr.bf16.mxu0 0
        %905 = vmatpush1.bf16.msra.mxu0 %v834
        %906 = vmatprep.subr.bf16.mxu0 0
        %907 = vmatpush1.bf16.msra.mxu0 %v837
        %908 = vmatprep.subr.bf16.mxu0 0
        %909 = vmatpush1.bf16.msra.mxu0 %v857
        %910 = vmatprep.subr.bf16.mxu0 0
        %911 = vmatpush1.bf16.msra.mxu0 0
        %912 = vmatprep.subr.bf16.mxu0 0
        %913 = vmatpush1.bf16.msra.mxu0 0
        %914 = vmatprep.subr.bf16.mxu0 0
        %915 = vmatpush1.bf16.msra.mxu0 0
        %916 = vmatprep.subr.bf16.mxu0 0
        %917 = vmatpush1.bf16.msra.mxu0 0
        %918 = vmatprep.subr.bf16.mxu0 0
        %919 = vmatpush1.bf16.msra.mxu0 0
        %920 = vmatprep.subr.bf16.mxu0 0
        %921 = vmatpush1.bf16.msra.mxu0 0
        %922 = vmatprep.subr.bf16.mxu0 0
        %923 = vmatpush1.bf16.msra.mxu0 0
        %924 = vmatprep.subr.bf16.mxu0 0
        %925 = vmatpush1.bf16.msra.mxu0 0
        %926 = vmatprep.subr.bf16.mxu0 0
        %927 = vmatpush1.bf16.msra.mxu0 0
        %928 = vmatprep.subr.bf16.mxu0 0
        %929 = vmatpush1.bf16.msra.mxu0 0
        %930 = vmatprep.subr.bf16.mxu0 0
        %931 = vmatpush1.bf16.msra.mxu0 0
        %932 = vmatprep.mubr.bf16.mxu0 0
        %933 = vmatmul.mubr.bf16.gmra.mrb[0].mxu0 %v848
        %v934 = vpop.f32.mrb[0].mxu0
        %v935 = vadd.f32 %v845, %v934
        %v936 = vpop.f32.mrb[0].mxu0
        %v937 = vpop.f32.mrb[0].mxu0
        %v938 = vpop.f32.mrb[0].mxu0
        %939 = vdwg.mxu0
        %v940 = vadd.f32 %v894, %v323
        %v941 = vadd.f32 %v896, %v324
        %v942 = vadd.f32 %v935, %v325
        %vm943 = vcmp.gt.f32.partialorder %v940, 0.0
        %vm944 = vcmp.gt.f32.partialorder %v941, 0.0
        %vm945 = vcmp.gt.f32.partialorder %v942, 0.0
        %v946 = vmul.f32 %v940, 0.1
        %v947 = vmul.f32 %v941, 0.1
        %v948 = vmul.f32 %v942, 0.1
        %v949 = vsel %vm943, %v940, %v946
        %v950 = vsel %vm944, %v941, %v947
        %v951 = vsel %vm945, %v942, %v948
        %952 = vst [vmem:[%s321] sm:$0xff] %v949
        %953 = vst [vmem:[%s321 + $0x8] sm:$0xff] %v950
        %954 = vst [vmem:[%s321 + $0x10] sm:$0xff] %v951
        %s955 = sand.u32 %s206, 1
        %s956 = scalar_lea.sflag [#allocation4], %s955
        %s957 = sand.u32 %s206, 1
        %s958 = smul.addr %s957, 24
        %s959 = scalar_lea.vmem [#allocation5], %s958
        // Predicated region
        $region57: #{tpu_custom_call.1} parent=51 // pred_check
          %p960 = pneg %p216
        $region58: #{tpu_custom_call.1} parent=51 // pred_check_branch
          %962 = sbr.rel (%p960) target = $region60
        $region59: #{tpu_custom_call.1} parent=51 // pred_region
          %s964 = ssub.s32 384, 384
          %965 = vsyncadd %s956, %s964
          %s966 = smul.addr %s25, 3
          %s967 = smul.addr %s966, 128
          %s968 = scalar_lea.hbm %s8, %s967
          %s970 = sshll.u32 %s959, 4
          %s971 = int_to_ptr.vmem [resolvable:$true] %s970
          %973 = dma.vmem_to_hbm [thread:$0]  %s971, 384, %s968, %s956
        $region60: #{tpu_custom_call.1} parent=51 // pred_fallthru
          _
      $region52: #{tpu_custom_call.1} parent=5 // pred_fallthru
        _
      %p974 = scmp.le.s32.totalorder 2, %s20
      // Predicated region
      $region61: #{tpu_custom_call.1} parent=5 // pred_check
        %p975 = pneg %p974
      $region62: #{tpu_custom_call.1} parent=5 // pred_check_branch
        %977 = sbr.rel (%p975) target = $region64
      $region63: #{tpu_custom_call.1} parent=5 // pred_region
        %s978 = ssub.s32 %s20, 2
        // Predicated region
        $region65: #{tpu_custom_call.1} parent=63 // pred_check
          %p979 = pneg %p222
        $region66: #{tpu_custom_call.1} parent=63 // pred_check_branch
          %981 = sbr.rel (%p979) target = $region68
        $region67: #{tpu_custom_call.1} parent=63 // pred_region
          %s982 = sand.u32 %s207, 1
          %s983 = scalar_lea.sflag [#allocation4], %s982
          %s984 = sand.u32 %s207, 1
          %s985 = smul.addr %s984, 24
          %s986 = scalar_lea.vmem [#allocation5], %s985
          %987 = dma.done %s983, 384
        $region68: #{tpu_custom_call.1} parent=63 // pred_fallthru
          _
      $region64: #{tpu_custom_call.1} parent=5 // pred_fallthru
        _
    $region6: #{tpu_custom_call.1} parent=1 // loop_footer
      %s24 = sadd.s32 1, %s20
    $region7: #{tpu_custom_call.1} parent=1 // loop_footer_branch
      %19 = sbr.rel target = $region3
    $region8: #{tpu_custom_call.1} parent=1 // loop_exit
      _
    %988 = vsyncpa [#allocation3], 1
    %s989 = scalar_lea.sflag [#allocation3], 1
    %990 = vsyncpa %s989, 1
    %991 = vsyncpa [#allocation4], 1
    %s992 = scalar_lea.sflag [#allocation4], 1
    %993 = vsyncpa %s992, 1

</llo_original>
